<compile_context>
chip_gen: v5e
topology: v5e:2x2
jax: 0.10.0
libtpu: 0.0.40
codegen_flags: <defaults>
</compile_context>

<pallas_src>
import jax
import jax.numpy as jnp
from jax.experimental import pallas as pl
from jax.experimental.pallas import tpu as pltpu

EPS = 1e-5                        # BatchNorm eps (PyTorch default)
VMEM_LIMIT = 48 * 1024 * 1024     # explicit scoped-VMEM budget (fits v5e/v6e/v7x)
# MXU input dtype for the matmuls (accumulation is always f32).  float32 keeps
# exact parity with the PyTorch module; set to jnp.bfloat16 for ~2-4x MXU
# throughput and half the VMEM/HBM matmul footprint at slightly lower precision.
MATMUL_DTYPE = jnp.float32


def _mish(a):
    # PyTorch nn.Mish: x * tanh(softplus(x)); softplus threshold = 20
    sp = jnp.where(a > 20.0, a, jnp.log1p(jnp.exp(jnp.minimum(a, 20.0))))
    return a * jnp.tanh(sp)


def _pick_row_tile(h, bytes_per_row, budget_bytes=6 * 1024 * 1024):
    """Largest divisor of `h` whose per-step working set fits the budget; prefer
    >= 2 row tiles so the BlockSpec pipeline can overlap DMA with compute."""
    divisors = [d for d in range(1, h + 1) if h % d == 0]
    fitting = [d for d in divisors if d * bytes_per_row <= budget_bytes] or [1]
    th = max(fitting)
    if th == h and h > 8:
        smaller = [d for d in fitting if d < h]
        if smaller:
            th = max(smaller)
    return th


# ----------------------------------------------------------------------------
# Kernel 1: fused (folded BatchNorm affine) -> Mish -> zero-pad -> 3x3 conv
#           one packed im2col matmul per row tile
# ----------------------------------------------------------------------------
def bn_mish_conv3x3(x, scale, shift, w9, bias):
    """x: (N,H,W,C); scale/shift: (1,C); w9: (9*C, Cout) [(ky,kx,cin) packed];
    bias: (1,Cout).  Returns (N,H,W,Cout) float32."""
    N, H, W, C = x.shape
    Cout = w9.shape[-1]
    assert w9.shape[0] == 9 * C
    TH = _pick_row_tile(H, 4 * W * (12 * C + 2 * Cout))
    R = H // TH

    def kernel(xc_ref, xt_ref, xb_ref, s_ref, t_ref, w_ref, b_ref, o_ref,
               act_ref, patch_ref):
        r = pl.program_id(1)
        last_r = pl.num_programs(1) - 1
        s = s_ref[...]
        t = t_ref[...]
        # folded BN + Mish.  Zero padding is applied AFTER the activation
        # (padding_mode='zeros'): the halo rows come from the neighbouring row
        # tiles and are forced to zero at the image borders.  All scratch
        # writes are leading-dim (aligned) slices.
        act_ref[1:TH + 1, :, :] = _mish(xc_ref[0] * s + t)
        act_ref[0, :, :] = jnp.where(r == 0, 0.0, _mish(xt_ref[0, 0] * s + t))
        act_ref[TH + 1, :, :] = jnp.where(r == last_r, 0.0,
                                          _mish(xb_ref[0, 0] * s + t))

        # column-border masks (hoisted out of the tap loop)
        col = jax.lax.broadcasted_iota(jnp.int32, (TH, W, C), 1).reshape(TH * W, C)
        first_col = col == 0
        last_col = col == W - 1
        zrow = jnp.zeros((1, C), jnp.float32)

        # in-VMEM im2col: the dy shift is an aligned leading-dim slice of the
        # H-padded scratch; the dx shift is a register-level shift + mask
        # (no misaligned VMEM loads/stores are generated).
        for dy in range(3):
            rows = act_ref[dy:dy + TH, :, :].reshape(TH * W, C)
            left = jnp.where(first_col, 0.0,
                             jnp.concatenate([zrow, rows[:TH * W - 1, :]], axis=0))
            right = jnp.where(last_col, 0.0,
                              jnp.concatenate([rows[1:, :], zrow], axis=0))
            patch_ref[:, (3 * dy + 0) * C:(3 * dy + 1) * C] = left.astype(MATMUL_DTYPE)
            patch_ref[:, (3 * dy + 1) * C:(3 * dy + 2) * C] = rows.astype(MATMUL_DTYPE)
            patch_ref[:, (3 * dy + 2) * C:(3 * dy + 3) * C] = right.astype(MATMUL_DTYPE)

        # single packed MXU matmul: (TH*W, 9C) x (9C, Cout), f32 accumulation
        acc = jnp.dot(patch_ref[...], w_ref[...].astype(MATMUL_DTYPE),
                      preferred_element_type=jnp.float32)
        o_ref[0] = (acc + b_ref[...]).reshape(TH, W, Cout)

    return pl.pallas_call(
        kernel,
        out_shape=jax.ShapeDtypeStruct((N, H, W, Cout), jnp.float32),
        grid=(N, R),
        in_specs=[
            pl.BlockSpec((1, TH, W, C), lambda n, r: (n, r, 0, 0)),
            # 1-row halo blocks above/below the tile (clamped at the borders;
            # the kernel masks them to zero there).
            pl.BlockSpec((1, 1, W, C),
                         lambda n, r: (n, jnp.maximum(r * TH - 1, 0), 0, 0)),
            pl.BlockSpec((1, 1, W, C),
                         lambda n, r: (n, jnp.minimum(r * TH + TH, H - 1), 0, 0)),
            pl.BlockSpec((1, C), lambda n, r: (0, 0)),
            pl.BlockSpec((1, C), lambda n, r: (0, 0)),
            pl.BlockSpec((9 * C, Cout), lambda n, r: (0, 0)),
            pl.BlockSpec((1, Cout), lambda n, r: (0, 0)),
        ],
        out_specs=pl.BlockSpec((1, TH, W, Cout), lambda n, r: (n, r, 0, 0)),
        scratch_shapes=[
            pltpu.VMEM((TH + 2, W, C), jnp.float32),        # H-halo'd activation
            pltpu.VMEM((TH * W, 9 * C), MATMUL_DTYPE),      # packed im2col
        ],
        compiler_params=pltpu.CompilerParams(
            dimension_semantics=("parallel", "parallel"),
            vmem_limit_bytes=VMEM_LIMIT),
    )(x, x, x, scale, shift, w9, bias)


# ----------------------------------------------------------------------------
# Kernel 2: GateLayer (single (C,2C) 1x1-conv matmul -> tanh*sigmoid)
#           fused with residual add and 1/rescale
# ----------------------------------------------------------------------------
def gate_residual(h, x_res, w, b, rescale):
    """h, x_res: (N,H,W,C); w: (C,2C) = [value cols | gate cols]; b: (1,2C)."""
    N, H, W, C = h.shape
    inv = 1.0 / rescale
    TH = _pick_row_tile(H, 4 * W * 6 * C)
    R = H // TH

    def kernel(h_ref, x_ref, w_ref, b_ref, o_ref):
        hm = h_ref[0].reshape(TH * W, C)
        v = jnp.dot(hm.astype(MATMUL_DTYPE), w_ref[...].astype(MATMUL_DTYPE),
                    preferred_element_type=jnp.float32) + b_ref[...]
        gated = jnp.tanh(v[:, :C]) * jax.nn.sigmoid(v[:, C:])
        out = (gated + x_ref[0].reshape(TH * W, C)) * inv
        o_ref[0] = out.reshape(TH, W, C)

    return pl.pallas_call(
        kernel,
        out_shape=jax.ShapeDtypeStruct((N, H, W, C), jnp.float32),
        grid=(N, R),
        in_specs=[
            pl.BlockSpec((1, TH, W, C), lambda n, r: (n, r, 0, 0)),
            pl.BlockSpec((1, TH, W, C), lambda n, r: (n, r, 0, 0)),
            pl.BlockSpec((C, 2 * C), lambda n, r: (0, 0)),
            pl.BlockSpec((1, 2 * C), lambda n, r: (0, 0)),
        ],
        out_specs=pl.BlockSpec((1, TH, W, C), lambda n, r: (n, r, 0, 0)),
        compiler_params=pltpu.CompilerParams(
            dimension_semantics=("parallel", "parallel"),
            vmem_limit_bytes=VMEM_LIMIT),
    )(h, x_res, w, b)


# ----------------------------------------------------------------------------
# Kernel 3: 3x3 stride-2 reflect-pad down-conv.  The im2col stays in VMEM; the
# kernel reads four stride-2 decimation phase planes (~1x input HBM traffic
# instead of materializing a 9x im2col in HBM).
# ----------------------------------------------------------------------------
def down_conv_s2_reflect(x, w, b):
    """Conv(C,Cout,3,stride=2,padding=1,padding_mode='reflect'); x: (N,H,W,C),
    w: (3,3,Cin,Cout), b: (Cout,)."""
    N, H, W, C = x.shape
    Cout = w.shape[-1]
    Ho, Wo = (H - 1) // 2 + 1, (W - 1) // 2 + 1
    # reflect pad in glue (+2 rows/cols only), then pad up to even extents so
    # the four phase planes share one shape (padded values are never read).
    xp = jnp.pad(x, ((0, 0), (1, 1), (1, 1), (0, 0)), mode='reflect')
    xp = jnp.pad(xp, ((0, 0), (0, 2 * Ho + 2 - (H + 2)),
                      (0, 2 * Wo + 2 - (W + 2)), (0, 0)))
    planes = [xp[:, py::2, px::2, :] for py in (0, 1) for px in (0, 1)]
    w2 = w.reshape(9 * C, Cout)
    b2 = b.reshape(1, Cout)

    def kernel(pee_ref, peo_ref, poe_ref, poo_ref, w_ref, b_ref, o_ref, patch_ref):
        planes_ref = ((pee_ref, peo_ref), (poe_ref, poo_ref))
        for dy in range(3):
            for dx in range(3):
                pr = planes_ref[dy % 2][dx % 2]
                tap = pr[0, dy // 2:dy // 2 + Ho, dx // 2:dx // 2 + Wo, :]
                patch_ref[:, (3 * dy + dx) * C:(3 * dy + dx + 1) * C] = (
                    tap.reshape(Ho * Wo, C).astype(MATMUL_DTYPE))
        acc = jnp.dot(patch_ref[...], w_ref[...].astype(MATMUL_DTYPE),
                      preferred_element_type=jnp.float32)
        o_ref[0] = (acc + b_ref[...]).reshape(Ho, Wo, Cout)

    # TODO(synk): row-tile this kernel too (same halo trick as bn_mish_conv3x3)
    # if Ho*Wo*9*C no longer fits VMEM at very large resolutions.
    return pl.pallas_call(
        kernel,
        out_shape=jax.ShapeDtypeStruct((N, Ho, Wo, Cout), jnp.float32),
        grid=(N,),
        in_specs=[pl.BlockSpec((1, Ho + 1, Wo + 1, C), lambda n: (n, 0, 0, 0))] * 4 + [
            pl.BlockSpec((9 * C, Cout), lambda n: (0, 0)),
            pl.BlockSpec((1, Cout), lambda n: (0, 0)),
        ],
        out_specs=pl.BlockSpec((1, Ho, Wo, Cout), lambda n: (n, 0, 0, 0)),
        scratch_shapes=[pltpu.VMEM((Ho * Wo, 9 * C), MATMUL_DTYPE)],
        compiler_params=pltpu.CompilerParams(
            dimension_semantics=("parallel",),
            vmem_limit_bytes=VMEM_LIMIT),
    )(*planes, w2, b2)


# ----------------------------------------------------------------------------
# Module glue
# ----------------------------------------------------------------------------
def _bn_affine(x, gamma, beta):
    # training-mode BatchNorm: batch statistics over (N,H,W), biased variance,
    # folded into a per-channel affine applied inside the fused conv kernel.
    m = jnp.mean(x, axis=(0, 1, 2))
    v = jnp.var(x, axis=(0, 1, 2))
    scale = gamma / jnp.sqrt(v + EPS)
    shift = beta - m * scale
    return scale.reshape(1, -1), shift.reshape(1, -1)
    # TODO(synk): running_mean/running_var buffer updates (stateful training
    # bookkeeping) are not modeled; they do not affect the forward output.


def res_block_with_resampling(x, p, rescale=1.0):
    if p['down']:
        x = down_conv_s2_reflect(x, p['wd'], p['bd'])   # pre_conv (resample='down')
    # else: pre_conv is Identity (c_in == c_out inside BottomUpLayer)
    s1, t1 = _bn_affine(x, p['g1'], p['be1'])
    h = bn_mish_conv3x3(x, s1, t1, p['w1'], p['b1'])
    s2, t2 = _bn_affine(h, p['g2'], p['be2'])
    h = bn_mish_conv3x3(h, s2, t2, p['w2'], p['b2'])
    return gate_residual(h, x, p['wg'], p['bg'], rescale)


def bottom_up_layer(x_nchw, params, rescale=1.0):
    x = jnp.transpose(x_nchw, (0, 2, 3, 1))   # NCHW -> NHWC
    for p in params:
        x = res_block_with_resampling(x, p, rescale)
    return jnp.transpose(x, (0, 3, 1, 2))     # NHWC -> NCHW


def init_params(key, n_res_blocks, n_filters, downsampling_steps):
    C = n_filters
    params = []
    for i in range(n_res_blocks):
        ks = jax.random.split(jax.random.fold_in(key, i), 12)
        down = downsampling_steps > 0
        if down:
            downsampling_steps -= 1
        p = {'down': down}
        if down:
            p['wd'] = 0.2 * jax.random.normal(ks[0], (3, 3, C, C), jnp.float32)
            p['bd'] = 0.1 * jax.random.normal(ks[1], (C,), jnp.float32)
        p['g1'] = 1.0 + 0.1 * jax.random.normal(ks[2], (C,), jnp.float32)
        p['be1'] = 0.1 * jax.random.normal(ks[3], (C,), jnp.float32)
        # 3x3 conv weights pre-packed for the im2col matmul: (ky,kx,cin) -> 9C
        p['w1'] = (0.2 * jax.random.normal(ks[4], (3, 3, C, C), jnp.float32)).reshape(9 * C, C)
        p['b1'] = 0.1 * jax.random.normal(ks[5], (1, C), jnp.float32)
        p['g2'] = 1.0 + 0.1 * jax.random.normal(ks[6], (C,), jnp.float32)
        p['be2'] = 0.1 * jax.random.normal(ks[7], (C,), jnp.float32)
        p['w2'] = (0.2 * jax.random.normal(ks[8], (3, 3, C, C), jnp.float32)).reshape(9 * C, C)
        p['b2'] = 0.1 * jax.random.normal(ks[9], (1, C), jnp.float32)
        # GateLayer: 1x1 conv C -> 2C with interleaved outputs (0::2 value /
        # 1::2 gate).  Deinterleave the columns once here so the kernel runs a
        # single (C, 2C) matmul: first C columns = tanh path, last C = sigmoid.
        wg_full = 0.2 * jax.random.normal(ks[10], (C, 2 * C), jnp.float32)
        bg_full = 0.1 * jax.random.normal(ks[11], (1, 2 * C), jnp.float32)
        p['wg'] = jnp.concatenate([wg_full[:, 0::2], wg_full[:, 1::2]], axis=1)
        p['bg'] = jnp.concatenate([bg_full[:, 0::2], bg_full[:, 1::2]], axis=1)
        params.append(p)
    return params


if __name__ == "__main__":
    key = jax.random.PRNGKey(0)
    kx, kp = jax.random.split(key)

    # BottomUpLayer(n_res_blocks=2, n_filters=4, downsampling_steps=1, dimensions=2)
    N, C, H, W = 2, 4, 16, 16
    x = jax.random.normal(kx, (N, C, H, W), jnp.float32)          # NCHW input
    params = init_params(kp, n_res_blocks=2, n_filters=C, downsampling_steps=1)

    out = bottom_up_layer(x, params, rescale=1.0)
    out = jax.block_until_ready(out)
    assert out.shape == (N, C, H // 2, W // 2), out.shape
    assert bool(jnp.all(jnp.isfinite(out)))
    print("KERNEL_OK")
</pallas_src>

<mosaic_0001>
module attributes {stable_mosaic.version = 11 : i64} {
  func.func @kernel(%arg0: i32, %arg1: memref<1x9x9x4xf32, #tpu.memory_space<vmem>>, %arg2: memref<1x9x9x4xf32, #tpu.memory_space<vmem>>, %arg3: memref<1x9x9x4xf32, #tpu.memory_space<vmem>>, %arg4: memref<1x9x9x4xf32, #tpu.memory_space<vmem>>, %arg5: memref<36x4xf32, #tpu.memory_space<vmem>>, %arg6: memref<1x4xf32, #tpu.memory_space<vmem>>, %arg7: memref<1x8x8x4xf32, #tpu.memory_space<vmem>>, %arg8: memref<64x36xf32, #tpu.memory_space<vmem>>) attributes {dimension_semantics = [#tpu.dimension_semantics<parallel>], iteration_bounds = array<i64: 2>, scalar_prefetch = 0 : i64, scratch_operands = 1 : i64, tpu.core_type = #tpu.core_type<tc>, window_params = [{transform_indices = @transform_0, window_bounds = array<i64: 1, 9, 9, 4>}, {transform_indices = @transform_1, window_bounds = array<i64: 1, 9, 9, 4>}, {transform_indices = @transform_2, window_bounds = array<i64: 1, 9, 9, 4>}, {transform_indices = @transform_3, window_bounds = array<i64: 1, 9, 9, 4>}, {pipeline_mode = #tpu.pipeline_mode<synchronous>, transform_indices = @transform_4, window_bounds = array<i64: 36, 4>}, {pipeline_mode = #tpu.pipeline_mode<synchronous>, transform_indices = @transform_5, window_bounds = array<i64: 1, 4>}, {transform_indices = @transform_6, window_bounds = array<i64: 1, 8, 8, 4>}]} {
    %c0 = arith.constant 0 : index
    %c0_0 = arith.constant 0 : index
    %c0_1 = arith.constant 0 : index
    %c0_2 = arith.constant 0 : index
    %0 = vector.load %arg1[%c0, %c0_0, %c0_1, %c0_2] : memref<1x9x9x4xf32, #tpu.memory_space<vmem>>, vector<1x8x8x4xf32>
    %1 = vector.shape_cast %0 : vector<1x8x8x4xf32> to vector<8x8x4xf32>
    %2 = vector.shape_cast %1 : vector<8x8x4xf32> to vector<64x4xf32>
    %c0_3 = arith.constant 0 : index
    %c0_4 = arith.constant 0 : index
    %3 = vector.load %arg8[%c0_3, %c0_4] : memref<64x36xf32, #tpu.memory_space<vmem>>, vector<64x4xf32>
    tpu.vector_store %arg8[%c0_3, %c0_4], %2 {strides = array<i32>} : memref<64x36xf32, #tpu.memory_space<vmem>>, vector<64x4xf32>,
    %c0_5 = arith.constant 0 : index
    %c0_6 = arith.constant 0 : index
    %c0_7 = arith.constant 0 : index
    %c0_8 = arith.constant 0 : index
    %4 = vector.load %arg2[%c0_5, %c0_6, %c0_7, %c0_8] : memref<1x9x9x4xf32, #tpu.memory_space<vmem>>, vector<1x8x8x4xf32>
    %5 = vector.shape_cast %4 : vector<1x8x8x4xf32> to vector<8x8x4xf32>
    %6 = vector.shape_cast %5 : vector<8x8x4xf32> to vector<64x4xf32>
    %c0_9 = arith.constant 0 : index
    %c4 = arith.constant 4 : index
    %7 = vector.load %arg8[%c0_9, %c4] : memref<64x36xf32, #tpu.memory_space<vmem>>, vector<64x4xf32>
    tpu.vector_store %arg8[%c0_9, %c4], %6 {strides = array<i32>} : memref<64x36xf32, #tpu.memory_space<vmem>>, vector<64x4xf32>,
    %c0_10 = arith.constant 0 : index
    %c0_11 = arith.constant 0 : index
    %c1 = arith.constant 1 : index
    %c0_12 = arith.constant 0 : index
    %8 = vector.load %arg1[%c0_10, %c0_11, %c1, %c0_12] : memref<1x9x9x4xf32, #tpu.memory_space<vmem>>, vector<1x8x8x4xf32>
    %9 = vector.shape_cast %8 : vector<1x8x8x4xf32> to vector<8x8x4xf32>
    %10 = vector.shape_cast %9 : vector<8x8x4xf32> to vector<64x4xf32>
    %c0_13 = arith.constant 0 : index
    %c8 = arith.constant 8 : index
    %11 = vector.load %arg8[%c0_13, %c8] : memref<64x36xf32, #tpu.memory_space<vmem>>, vector<64x4xf32>
    tpu.vector_store %arg8[%c0_13, %c8], %10 {strides = array<i32>} : memref<64x36xf32, #tpu.memory_space<vmem>>, vector<64x4xf32>,
    %c0_14 = arith.constant 0 : index
    %c0_15 = arith.constant 0 : index
    %c0_16 = arith.constant 0 : index
    %c0_17 = arith.constant 0 : index
    %12 = vector.load %arg3[%c0_14, %c0_15, %c0_16, %c0_17] : memref<1x9x9x4xf32, #tpu.memory_space<vmem>>, vector<1x8x8x4xf32>
    %13 = vector.shape_cast %12 : vector<1x8x8x4xf32> to vector<8x8x4xf32>
    %14 = vector.shape_cast %13 : vector<8x8x4xf32> to vector<64x4xf32>
    %c0_18 = arith.constant 0 : index
    %c12 = arith.constant 12 : index
    %15 = vector.load %arg8[%c0_18, %c12] : memref<64x36xf32, #tpu.memory_space<vmem>>, vector<64x4xf32>
    tpu.vector_store %arg8[%c0_18, %c12], %14 {strides = array<i32>} : memref<64x36xf32, #tpu.memory_space<vmem>>, vector<64x4xf32>,
    %c0_19 = arith.constant 0 : index
    %c0_20 = arith.constant 0 : index
    %c0_21 = arith.constant 0 : index
    %c0_22 = arith.constant 0 : index
    %16 = vector.load %arg4[%c0_19, %c0_20, %c0_21, %c0_22] : memref<1x9x9x4xf32, #tpu.memory_space<vmem>>, vector<1x8x8x4xf32>
    %17 = vector.shape_cast %16 : vector<1x8x8x4xf32> to vector<8x8x4xf32>
    %18 = vector.shape_cast %17 : vector<8x8x4xf32> to vector<64x4xf32>
    %c0_23 = arith.constant 0 : index
    %c16 = arith.constant 16 : index
    %19 = vector.load %arg8[%c0_23, %c16] : memref<64x36xf32, #tpu.memory_space<vmem>>, vector<64x4xf32>
    tpu.vector_store %arg8[%c0_23, %c16], %18 {strides = array<i32>} : memref<64x36xf32, #tpu.memory_space<vmem>>, vector<64x4xf32>,
    %c0_24 = arith.constant 0 : index
    %c0_25 = arith.constant 0 : index
    %c1_26 = arith.constant 1 : index
    %c0_27 = arith.constant 0 : index
    %20 = vector.load %arg3[%c0_24, %c0_25, %c1_26, %c0_27] : memref<1x9x9x4xf32, #tpu.memory_space<vmem>>, vector<1x8x8x4xf32>
    %21 = vector.shape_cast %20 : vector<1x8x8x4xf32> to vector<8x8x4xf32>
    %22 = vector.shape_cast %21 : vector<8x8x4xf32> to vector<64x4xf32>
    %c0_28 = arith.constant 0 : index
    %c20 = arith.constant 20 : index
    %23 = vector.load %arg8[%c0_28, %c20] : memref<64x36xf32, #tpu.memory_space<vmem>>, vector<64x4xf32>
    tpu.vector_store %arg8[%c0_28, %c20], %22 {strides = array<i32>} : memref<64x36xf32, #tpu.memory_space<vmem>>, vector<64x4xf32>,
    %c0_29 = arith.constant 0 : index
    %c1_30 = arith.constant 1 : index
    %c0_31 = arith.constant 0 : index
    %c0_32 = arith.constant 0 : index
    %24 = vector.load %arg1[%c0_29, %c1_30, %c0_31, %c0_32] : memref<1x9x9x4xf32, #tpu.memory_space<vmem>>, vector<1x8x8x4xf32>
    %25 = vector.shape_cast %24 : vector<1x8x8x4xf32> to vector<8x8x4xf32>
    %26 = vector.shape_cast %25 : vector<8x8x4xf32> to vector<64x4xf32>
    %c0_33 = arith.constant 0 : index
    %c24 = arith.constant 24 : index
    %27 = vector.load %arg8[%c0_33, %c24] : memref<64x36xf32, #tpu.memory_space<vmem>>, vector<64x4xf32>
    tpu.vector_store %arg8[%c0_33, %c24], %26 {strides = array<i32>} : memref<64x36xf32, #tpu.memory_space<vmem>>, vector<64x4xf32>,
    %c0_34 = arith.constant 0 : index
    %c1_35 = arith.constant 1 : index
    %c0_36 = arith.constant 0 : index
    %c0_37 = arith.constant 0 : index
    %28 = vector.load %arg2[%c0_34, %c1_35, %c0_36, %c0_37] : memref<1x9x9x4xf32, #tpu.memory_space<vmem>>, vector<1x8x8x4xf32>
    %29 = vector.shape_cast %28 : vector<1x8x8x4xf32> to vector<8x8x4xf32>
    %30 = vector.shape_cast %29 : vector<8x8x4xf32> to vector<64x4xf32>
    %c0_38 = arith.constant 0 : index
    %c28 = arith.constant 28 : index
    %31 = vector.load %arg8[%c0_38, %c28] : memref<64x36xf32, #tpu.memory_space<vmem>>, vector<64x4xf32>
    tpu.vector_store %arg8[%c0_38, %c28], %30 {strides = array<i32>} : memref<64x36xf32, #tpu.memory_space<vmem>>, vector<64x4xf32>,
    %c0_39 = arith.constant 0 : index
    %c1_40 = arith.constant 1 : index
    %c1_41 = arith.constant 1 : index
    %c0_42 = arith.constant 0 : index
    %32 = vector.load %arg1[%c0_39, %c1_40, %c1_41, %c0_42] : memref<1x9x9x4xf32, #tpu.memory_space<vmem>>, vector<1x8x8x4xf32>
    %33 = vector.shape_cast %32 : vector<1x8x8x4xf32> to vector<8x8x4xf32>
    %34 = vector.shape_cast %33 : vector<8x8x4xf32> to vector<64x4xf32>
    %c0_43 = arith.constant 0 : index
    %c32 = arith.constant 32 : index
    %35 = vector.load %arg8[%c0_43, %c32] : memref<64x36xf32, #tpu.memory_space<vmem>>, vector<64x4xf32>
    tpu.vector_store %arg8[%c0_43, %c32], %34 {strides = array<i32>} : memref<64x36xf32, #tpu.memory_space<vmem>>, vector<64x4xf32>,
    %c0_44 = arith.constant 0 : index
    %c0_45 = arith.constant 0 : index
    %36 = vector.load %arg8[%c0_44, %c0_45] : memref<64x36xf32, #tpu.memory_space<vmem>>, vector<64x36xf32>
    %c0_46 = arith.constant 0 : index
    %c0_47 = arith.constant 0 : index
    %37 = vector.load %arg5[%c0_46, %c0_47] : memref<36x4xf32, #tpu.memory_space<vmem>>, vector<36x4xf32>
    %cst = arith.constant dense<0.000000e+00> : vector<64x4xf32>
    %38 = tpu.matmul %36, %37, %cst {dimension_numbers = #tpu.dot_dimension_numbers<[1], [0], [0], [1], [0, 0, 1, 1], [], []>} : vector<64x36xf32>, vector<36x4xf32>, vector<64x4xf32> -> vector<64x4xf32>
    %c0_48 = arith.constant 0 : index
    %c0_49 = arith.constant 0 : index
    %39 = vector.load %arg6[%c0_48, %c0_49] : memref<1x4xf32, #tpu.memory_space<vmem>>, vector<1x4xf32>
    %40 = vector.broadcast %39 : vector<1x4xf32> to vector<64x4xf32>
    %41 = arith.addf %38, %40 : vector<64x4xf32>
    %42 = vector.shape_cast %41 : vector<64x4xf32> to vector<8x8x4xf32>
    %c0_50 = arith.constant 0 : index
    %c0_51 = arith.constant 0 : index
    %c0_52 = arith.constant 0 : index
    %c0_53 = arith.constant 0 : index
    %43 = vector.load %arg7[%c0_50, %c0_51, %c0_52, %c0_53] : memref<1x8x8x4xf32, #tpu.memory_space<vmem>>, vector<1x8x8x4xf32>
    %44 = vector.shape_cast %43 : vector<1x8x8x4xf32> to vector<8x8x4xf32>
    %45 = vector.shape_cast %42 : vector<8x8x4xf32> to vector<1x8x8x4xf32>
    tpu.vector_store %arg7[%c0_50, %c0_51, %c0_52, %c0_53], %45 {strides = array<i32>} : memref<1x8x8x4xf32, #tpu.memory_space<vmem>>, vector<1x8x8x4xf32>,
    return
  }
  func.func @transform_0(%arg0: i32) -> (i32, i32, i32, i32) {
    %c0_i32 = arith.constant 0 : i32
    %c0_i32_0 = arith.constant 0 : i32
    %c0_i32_1 = arith.constant 0 : i32
    %c0_i32_2 = arith.constant 0 : i32
    return %arg0, %c0_i32, %c0_i32_0, %c0_i32_1 : i32, i32, i32, i32
  }
  func.func @transform_1(%arg0: i32) -> (i32, i32, i32, i32) {
    %c0_i32 = arith.constant 0 : i32
    %c0_i32_0 = arith.constant 0 : i32
    %c0_i32_1 = arith.constant 0 : i32
    %c0_i32_2 = arith.constant 0 : i32
    return %arg0, %c0_i32, %c0_i32_0, %c0_i32_1 : i32, i32, i32, i32
  }
  func.func @transform_2(%arg0: i32) -> (i32, i32, i32, i32) {
    %c0_i32 = arith.constant 0 : i32
    %c0_i32_0 = arith.constant 0 : i32
    %c0_i32_1 = arith.constant 0 : i32
    %c0_i32_2 = arith.constant 0 : i32
    return %arg0, %c0_i32, %c0_i32_0, %c0_i32_1 : i32, i32, i32, i32
  }
  func.func @transform_3(%arg0: i32) -> (i32, i32, i32, i32) {
    %c0_i32 = arith.constant 0 : i32
    %c0_i32_0 = arith.constant 0 : i32
    %c0_i32_1 = arith.constant 0 : i32
    %c0_i32_2 = arith.constant 0 : i32
    return %arg0, %c0_i32, %c0_i32_0, %c0_i32_1 : i32, i32, i32, i32
  }
  func.func @transform_4(%arg0: i32) -> (i32, i32) {
    %c0_i32 = arith.constant 0 : i32
    %c0_i32_0 = arith.constant 0 : i32
    %c0_i32_1 = arith.constant 0 : i32
    return %c0_i32, %c0_i32_0 : i32, i32
  }
  func.func @transform_5(%arg0: i32) -> (i32, i32) {
    %c0_i32 = arith.constant 0 : i32
    %c0_i32_0 = arith.constant 0 : i32
    %c0_i32_1 = arith.constant 0 : i32
    return %c0_i32, %c0_i32_0 : i32, i32
  }
  func.func @transform_6(%arg0: i32) -> (i32, i32, i32, i32) {
    %c0_i32 = arith.constant 0 : i32
    %c0_i32_0 = arith.constant 0 : i32
    %c0_i32_1 = arith.constant 0 : i32
    %c0_i32_2 = arith.constant 0 : i32
    return %arg0, %c0_i32, %c0_i32_0, %c0_i32_1 : i32, i32, i32, i32
  }
}

</mosaic_0001>

<llo_original>
// kernel: tpu_custom_call.1
$region0: #{tpu_custom_call.1}
  #allocation0 [shape = 'u32[]', space=smem, size = 0x4, offset = 0x4, fixed_abs, tag = 'smem constant byte address 0x4 - core index']
  #allocation1 [shape = 'u32[72,128]{1,0:T(1,128)}', space=vmem, size = 0x9000, scoped, tag = 'internal scratch']
  #allocation2 [shape = 'f32[64,36]{1,0:T(8,128)}', space=vmem, size = 0x8000, scoped, tag = 'scratch operand']
  %s0 = inlined_call_operand.vmem [shape: f32[2,9,9,4], index: 0, kind: input, shape index: {}]
  %s1 = inlined_call_operand.vmem [shape: f32[2,9,9,4], index: 1, kind: input, shape index: {}]
  %s2 = inlined_call_operand.vmem [shape: f32[2,9,9,4], index: 2, kind: input, shape index: {}]
  %s3 = inlined_call_operand.vmem [shape: f32[2,9,9,4], index: 3, kind: input, shape index: {}]
  %s4 = inlined_call_operand.vmem [shape: f32[36,4], index: 4, kind: input, shape index: {}]
  %s5 = inlined_call_operand.vmem [shape: f32[1,4], index: 5, kind: input, shape index: {}]
  %s6 = inlined_call_operand.vmem [shape: f32[2,8,8,4], index: 6, kind: output, shape index: {}]
  %s7 = sld [smem:[#allocation0]]
  $region57: #{tpu_custom_call.1} parent=0
    _
  %s9 = ssub.s32 1, %s7
  %s10 = scalar_select 0, %s9, %s7
  loop: start=0, step=1, limit=4
  $region2: #{tpu_custom_call.1} parent=0 // loop_pre_header
    _
  $region3: #{tpu_custom_call.1} parent=0 // loop_header
    %s12 = sphi 0, %s16
    %p13 = scmp.ge.s32.totalorder %s12, 4
    %s22 = sphi 0, %s24
    %s25 = sphi 0, %s22
    %s26 = sphi 0, %s25
    %s42 = sphi 0, %s26
    %s48 = sphi 0, %s50
    %s51 = sphi 0, %s48
    %s52 = sphi 0, %s51
    %s68 = sphi 0, %s52
    %s74 = sphi 0, %s76
    %s77 = sphi 0, %s74
    %s78 = sphi 0, %s77
    %s94 = sphi 0, %s78
    %s100 = sphi 0, %s102
    %s103 = sphi 0, %s100
    %s104 = sphi 0, %s103
    %s120 = sphi 0, %s104
    %s124 = sphi 0, %s124
    %s126 = sphi 0, %s124
    %s127 = sphi 0, %s126
    %s141 = sphi 0, %s127
    %s145 = sphi 0, %s145
    %s147 = sphi 0, %s145
    %s148 = sphi 0, %s147
    %s162 = sphi 0, %s148
    %s168 = sphi 0, %s170
    %s171 = sphi 0, %s168
    %s172 = sphi 0, %s171
    %s188 = sphi 0, %s172
  $region4: #{tpu_custom_call.1} parent=0 // loop_header_branch
    %15 = sbr.rel (%p13) target = $region8
  $region5: #{tpu_custom_call.1} parent=0 // loop_body
    %s17 = ssub.s32 %s12, 1
    %s18 = ssub.s32 %s12, 2
    %s19 = sadd.s32 %s12, 1
    %s20 = ssub.s32 %s12, %s19
    %p21 = scmp.eq.s32.totalorder %s20, 0
    %s23 = sadd.s32 %s22, 1
    %s24 = scalar_select %p21, %s22, %s23
    %p27 = pneg %p21
    %p28 = scmp.eq.s32.totalorder %s12, 1
    %p29 = por %p27, %p28
    %p30 = scmp.ne.s32.totalorder %s22, %s25
    %p31 = scmp.eq.s32.totalorder %s12, 0
    %p32 = por %p30, %p31
    %p33 = scmp.ne.s32.totalorder %s22, %s25
    %p34 = scmp.eq.s32.totalorder %s17, 1
    %p35 = por %p33, %p34
    %p36 = scmp.ne.s32.totalorder %s25, %s26
    %p37 = scmp.eq.s32.totalorder %s17, 0
    %p38 = por %p36, %p37
    %p39 = scmp.ne.s32.totalorder %s25, %s26
    %p40 = scmp.eq.s32.totalorder %s18, 1
    %p41 = por %p39, %p40
    %p43 = scmp.ne.s32.totalorder %s26, %s42
    %p44 = scmp.eq.s32.totalorder %s18, 0
    %p45 = por %p43, %p44
    %s46 = ssub.s32 %s12, %s19
    %p47 = scmp.eq.s32.totalorder %s46, 0
    %s49 = sadd.s32 %s48, 1
    %s50 = scalar_select %p47, %s48, %s49
    %p53 = pneg %p47
    %p54 = scmp.eq.s32.totalorder %s12, 1
    %p55 = por %p53, %p54
    %p56 = scmp.ne.s32.totalorder %s48, %s51
    %p57 = scmp.eq.s32.totalorder %s12, 0
    %p58 = por %p56, %p57
    %p59 = scmp.ne.s32.totalorder %s48, %s51
    %p60 = scmp.eq.s32.totalorder %s17, 1
    %p61 = por %p59, %p60
    %p62 = scmp.ne.s32.totalorder %s51, %s52
    %p63 = scmp.eq.s32.totalorder %s17, 0
    %p64 = por %p62, %p63
    %p65 = scmp.ne.s32.totalorder %s51, %s52
    %p66 = scmp.eq.s32.totalorder %s18, 1
    %p67 = por %p65, %p66
    %p69 = scmp.ne.s32.totalorder %s52, %s68
    %p70 = scmp.eq.s32.totalorder %s18, 0
    %p71 = por %p69, %p70
    %s72 = ssub.s32 %s12, %s19
    %p73 = scmp.eq.s32.totalorder %s72, 0
    %s75 = sadd.s32 %s74, 1
    %s76 = scalar_select %p73, %s74, %s75
    %p79 = pneg %p73
    %p80 = scmp.eq.s32.totalorder %s12, 1
    %p81 = por %p79, %p80
    %p82 = scmp.ne.s32.totalorder %s74, %s77
    %p83 = scmp.eq.s32.totalorder %s12, 0
    %p84 = por %p82, %p83
    %p85 = scmp.ne.s32.totalorder %s74, %s77
    %p86 = scmp.eq.s32.totalorder %s17, 1
    %p87 = por %p85, %p86
    %p88 = scmp.ne.s32.totalorder %s77, %s78
    %p89 = scmp.eq.s32.totalorder %s17, 0
    %p90 = por %p88, %p89
    %p91 = scmp.ne.s32.totalorder %s77, %s78
    %p92 = scmp.eq.s32.totalorder %s18, 1
    %p93 = por %p91, %p92
    %p95 = scmp.ne.s32.totalorder %s78, %s94
    %p96 = scmp.eq.s32.totalorder %s18, 0
    %p97 = por %p95, %p96
    %s98 = ssub.s32 %s12, %s19
    %p99 = scmp.eq.s32.totalorder %s98, 0
    %s101 = sadd.s32 %s100, 1
    %s102 = scalar_select %p99, %s100, %s101
    %p105 = pneg %p99
    %p106 = scmp.eq.s32.totalorder %s12, 1
    %p107 = por %p105, %p106
    %p108 = scmp.ne.s32.totalorder %s100, %s103
    %p109 = scmp.eq.s32.totalorder %s12, 0
    %p110 = por %p108, %p109
    %p111 = scmp.ne.s32.totalorder %s100, %s103
    %p112 = scmp.eq.s32.totalorder %s17, 1
    %p113 = por %p111, %p112
    %p114 = scmp.ne.s32.totalorder %s103, %s104
    %p115 = scmp.eq.s32.totalorder %s17, 0
    %p116 = por %p114, %p115
    %p117 = scmp.ne.s32.totalorder %s103, %s104
    %p118 = scmp.eq.s32.totalorder %s18, 1
    %p119 = por %p117, %p118
    %p121 = scmp.ne.s32.totalorder %s104, %s120
    %p122 = scmp.eq.s32.totalorder %s18, 0
    %p123 = por %p121, %p122
    %s125 = sadd.s32 %s124, 1
    %p128 = scmp.eq.s32.totalorder %s12, 1
    %p129 = scmp.ne.s32.totalorder %s124, %s126
    %p130 = scmp.eq.s32.totalorder %s12, 0
    %p131 = por %p129, %p130
    %p132 = scmp.ne.s32.totalorder %s124, %s126
    %p133 = scmp.eq.s32.totalorder %s17, 1
    %p134 = por %p132, %p133
    %p135 = scmp.ne.s32.totalorder %s126, %s127
    %p136 = scmp.eq.s32.totalorder %s17, 0
    %p137 = por %p135, %p136
    %p138 = scmp.ne.s32.totalorder %s126, %s127
    %p139 = scmp.eq.s32.totalorder %s18, 1
    %p140 = por %p138, %p139
    %p142 = scmp.ne.s32.totalorder %s127, %s141
    %p143 = scmp.eq.s32.totalorder %s18, 0
    %p144 = por %p142, %p143
    %s146 = sadd.s32 %s145, 1
    %p149 = scmp.eq.s32.totalorder %s12, 1
    %p150 = scmp.ne.s32.totalorder %s145, %s147
    %p151 = scmp.eq.s32.totalorder %s12, 0
    %p152 = por %p150, %p151
    %p153 = scmp.ne.s32.totalorder %s145, %s147
    %p154 = scmp.eq.s32.totalorder %s17, 1
    %p155 = por %p153, %p154
    %p156 = scmp.ne.s32.totalorder %s147, %s148
    %p157 = scmp.eq.s32.totalorder %s17, 0
    %p158 = por %p156, %p157
    %p159 = scmp.ne.s32.totalorder %s147, %s148
    %p160 = scmp.eq.s32.totalorder %s18, 1
    %p161 = por %p159, %p160
    %p163 = scmp.ne.s32.totalorder %s148, %s162
    %p164 = scmp.eq.s32.totalorder %s18, 0
    %p165 = por %p163, %p164
    %s166 = ssub.s32 %s12, %s19
    %p167 = scmp.eq.s32.totalorder %s166, 0
    %s169 = sadd.s32 %s168, 1
    %s170 = scalar_select %p167, %s168, %s169
    %p173 = pneg %p167
    %p174 = scmp.eq.s32.totalorder %s12, 1
    %p175 = por %p173, %p174
    %p176 = scmp.ne.s32.totalorder %s168, %s171
    %p177 = scmp.eq.s32.totalorder %s12, 0
    %p178 = por %p176, %p177
    %p179 = scmp.ne.s32.totalorder %s168, %s171
    %p180 = scmp.eq.s32.totalorder %s17, 1
    %p181 = por %p179, %p180
    %p182 = scmp.ne.s32.totalorder %s171, %s172
    %p183 = scmp.eq.s32.totalorder %s17, 0
    %p184 = por %p182, %p183
    %p185 = scmp.ne.s32.totalorder %s171, %s172
    %p186 = scmp.eq.s32.totalorder %s18, 1
    %p187 = por %p185, %p186
    %p189 = scmp.ne.s32.totalorder %s172, %s188
    %p190 = scmp.eq.s32.totalorder %s18, 0
    %p191 = por %p189, %p190
    %p192 = scmp.le.s32.totalorder 1, %s12
    %p193 = scmp.lt.s32.totalorder %s12, 3
    %p194 = pnand %p192, %p193
    %p195 = pneg %p194
    // Predicated region
    $region9: #{tpu_custom_call.1} parent=5 // pred_check
      _
    $region10: #{tpu_custom_call.1} parent=5 // pred_check_branch
      %197 = sbr.rel (%p194) target = $region12
    $region11: #{tpu_custom_call.1} parent=5 // pred_region
      %s198 = ssub.s32 %s12, 1
      // Predicated region
      $region13: #{tpu_custom_call.1} parent=11 // pred_check
        %p199 = pneg %p137
      $region14: #{tpu_custom_call.1} parent=11 // pred_check_branch
        %201 = sbr.rel (%p199) target = $region16
      $region15: #{tpu_custom_call.1} parent=11 // pred_region
        _
      $region16: #{tpu_custom_call.1} parent=11 // pred_fallthru
        _
      // Predicated region
      $region17: #{tpu_custom_call.1} parent=11 // pred_check
        %p202 = pneg %p158
      $region18: #{tpu_custom_call.1} parent=11 // pred_check_branch
        %204 = sbr.rel (%p202) target = $region20
      $region19: #{tpu_custom_call.1} parent=11 // pred_region
        _
      $region20: #{tpu_custom_call.1} parent=11 // pred_fallthru
        _
    $region12: #{tpu_custom_call.1} parent=5 // pred_fallthru
      _
    %p205 = scmp.lt.s32.totalorder %s12, 2
    // Predicated region
    $region21: #{tpu_custom_call.1} parent=5 // pred_check
      %p206 = pneg %p205
    $region22: #{tpu_custom_call.1} parent=5 // pred_check_branch
      %208 = sbr.rel (%p206) target = $region24
    $region23: #{tpu_custom_call.1} parent=5 // pred_region
      // Predicated region
      $region25: #{tpu_custom_call.1} parent=23 // pred_check
        %p209 = pneg %p32
      $region26: #{tpu_custom_call.1} parent=23 // pred_check_branch
        %211 = sbr.rel (%p209) target = $region28
      $region27: #{tpu_custom_call.1} parent=23 // pred_region
        %p212 = scmp.lt.s32.totalorder %s12, 1
        %s213 = scalar_select %p212, %s12, 1
        %s214 = smul.addr %s213, 18
        %s215 = smul.addr %s214, 8
        %s216 = scalar_lea.vmem %s0, %s215
      $region28: #{tpu_custom_call.1} parent=23 // pred_fallthru
        _
      // Predicated region
      $region29: #{tpu_custom_call.1} parent=23 // pred_check
        %p217 = pneg %p58
      $region30: #{tpu_custom_call.1} parent=23 // pred_check_branch
        %219 = sbr.rel (%p217) target = $region32
      $region31: #{tpu_custom_call.1} parent=23 // pred_region
        %p220 = scmp.lt.s32.totalorder %s12, 1
        %s221 = scalar_select %p220, %s12, 1
        %s222 = smul.addr %s221, 18
        %s223 = smul.addr %s222, 8
        %s224 = scalar_lea.vmem %s1, %s223
      $region32: #{tpu_custom_call.1} parent=23 // pred_fallthru
        _
      // Predicated region
      $region33: #{tpu_custom_call.1} parent=23 // pred_check
        %p225 = pneg %p84
      $region34: #{tpu_custom_call.1} parent=23 // pred_check_branch
        %227 = sbr.rel (%p225) target = $region36
      $region35: #{tpu_custom_call.1} parent=23 // pred_region
        %p228 = scmp.lt.s32.totalorder %s12, 1
        %s229 = scalar_select %p228, %s12, 1
        %s230 = smul.addr %s229, 18
        %s231 = smul.addr %s230, 8
        %s232 = scalar_lea.vmem %s2, %s231
      $region36: #{tpu_custom_call.1} parent=23 // pred_fallthru
        _
      // Predicated region
      $region37: #{tpu_custom_call.1} parent=23 // pred_check
        %p233 = pneg %p110
      $region38: #{tpu_custom_call.1} parent=23 // pred_check_branch
        %235 = sbr.rel (%p233) target = $region40
      $region39: #{tpu_custom_call.1} parent=23 // pred_region
        %p236 = scmp.lt.s32.totalorder %s12, 1
        %s237 = scalar_select %p236, %s12, 1
        %s238 = smul.addr %s237, 18
        %s239 = smul.addr %s238, 8
        %s240 = scalar_lea.vmem %s3, %s239
      $region40: #{tpu_custom_call.1} parent=23 // pred_fallthru
        _
    $region24: #{tpu_custom_call.1} parent=5 // pred_fallthru
      _
    %p241 = scmp.le.s32.totalorder 1, %s12
    %p242 = scmp.lt.s32.totalorder %s12, 3
    %p243 = pnand %p241, %p242
    %p244 = pneg %p243
    // Predicated region
    $region41: #{tpu_custom_call.1} parent=5 // pred_check
      _
    $region42: #{tpu_custom_call.1} parent=5 // pred_check_branch
      %246 = sbr.rel (%p243) target = $region44
    $region43: #{tpu_custom_call.1} parent=5 // pred_region
      %s247 = ssub.s32 %s12, 1
      %p248 = scmp.lt.s32.totalorder %s17, 1
      %s249 = scalar_select %p248, %s17, 1
      %s250 = smul.addr %s249, 18
      %s251 = smul.addr %s250, 8
      %s252 = scalar_lea.vmem %s0, %s251
      %p253 = pneg %p38
      %p254 = pneg %p35
      %p255 = scmp.lt.s32.totalorder %s17, 1
      %s256 = scalar_select %p255, %s17, 1
      %s257 = smul.addr %s256, 18
      %s258 = smul.addr %s257, 8
      %s259 = scalar_lea.vmem %s1, %s258
      %p260 = pneg %p64
      %p261 = pneg %p61
      %p262 = scmp.lt.s32.totalorder %s17, 1
      %s263 = scalar_select %p262, %s17, 1
      %s264 = smul.addr %s263, 18
      %s265 = smul.addr %s264, 8
      %s266 = scalar_lea.vmem %s2, %s265
      %p267 = pneg %p90
      %p268 = pneg %p87
      %p269 = scmp.lt.s32.totalorder %s17, 1
      %s270 = scalar_select %p269, %s17, 1
      %s271 = smul.addr %s270, 18
      %s272 = smul.addr %s271, 8
      %s273 = scalar_lea.vmem %s3, %s272
      %p274 = pneg %p116
      %p275 = pneg %p113
      %p276 = pneg %p137
      %p277 = pneg %p134
      %p278 = pneg %p158
      %p279 = pneg %p155
      %p280 = pneg %p184
      %p281 = pneg %p181
      %p282 = scmp.lt.s32.totalorder %s17, 1
      %s283 = scalar_select %p282, %s17, 1
      %s284 = smul.addr %s283, 8
      %s285 = smul.addr %s284, 8
      %s286 = scalar_lea.vmem %s6, %s285
      %p287 = scmp.lt.s32.totalorder %s17, 1
      %s288 = scalar_select %p287, %s17, 1
      %s289 = smul.addr %s288, 18
      %s290 = smul.addr %s289, 8
      %s291 = scalar_lea.vmem %s0, %s290
      %p292 = scmp.lt.s32.totalorder %s17, 1
      %s293 = scalar_select %p292, %s17, 1
      %s294 = smul.addr %s293, 18
      %s295 = smul.addr %s294, 8
      %s296 = scalar_lea.vmem %s1, %s295
      %p297 = scmp.lt.s32.totalorder %s17, 1
      %s298 = scalar_select %p297, %s17, 1
      %s299 = smul.addr %s298, 18
      %s300 = smul.addr %s299, 8
      %s301 = scalar_lea.vmem %s2, %s300
      %p302 = scmp.lt.s32.totalorder %s17, 1
      %s303 = scalar_select %p302, %s17, 1
      %s304 = smul.addr %s303, 18
      %s305 = smul.addr %s304, 8
      %s306 = scalar_lea.vmem %s3, %s305
      %p307 = scmp.lt.s32.totalorder %s17, 1
      %s308 = scalar_select %p307, %s17, 1
      %s309 = smul.addr %s308, 8
      %s310 = smul.addr %s309, 8
      %s311 = scalar_lea.vmem %s6, %s310
      %v312 = vld [vmem:[%s291] sm:$0xff]
      %v313 = vld [vmem:[%s291 + $0x10] sm:$0xff]
      %v314 = vld [vmem:[%s291 + $0x20] sm:$0xff]
      %v315 = vld [vmem:[%s291 + $0x30] sm:$0xff]
      %v316 = vld [vmem:[%s291 + $0x40] sm:$0xff]
      %v317 = vld [vmem:[%s291 + $0x50] sm:$0xff]
      %v318 = vld [vmem:[%s291 + $0x60] sm:$0xff]
      %v319 = vld [vmem:[%s291 + $0x70] sm:$0xff]
      %vm320 = vcmask 31744
      %321 = vst.msk [vmem:[#allocation2] sm:$0xff] %vm320, %v312
      %322 = vst.msk [vmem:[#allocation2 + $0x8] sm:$0xff] %vm320, %v313
      %323 = vst.msk [vmem:[#allocation2 + $0x10] sm:$0xff] %vm320, %v314
      %324 = vst.msk [vmem:[#allocation2 + $0x18] sm:$0xff] %vm320, %v315
      %325 = vst.msk [vmem:[#allocation2 + $0x20] sm:$0xff] %vm320, %v316
      %326 = vst.msk [vmem:[#allocation2 + $0x28] sm:$0xff] %vm320, %v317
      %327 = vst.msk [vmem:[#allocation2 + $0x30] sm:$0xff] %vm320, %v318
      %328 = vst.msk [vmem:[#allocation2 + $0x38] sm:$0xff] %vm320, %v319
      %v329 = vld [vmem:[%s296] sm:$0xff]
      %v330 = vld [vmem:[%s296 + $0x10] sm:$0xff]
      %v331 = vld [vmem:[%s296 + $0x20] sm:$0xff]
      %v332 = vld [vmem:[%s296 + $0x30] sm:$0xff]
      %v333 = vld [vmem:[%s296 + $0x40] sm:$0xff]
      %v334 = vld [vmem:[%s296 + $0x50] sm:$0xff]
      %v335 = vld [vmem:[%s296 + $0x60] sm:$0xff]
      %v336 = vld [vmem:[%s296 + $0x70] sm:$0xff]
      %345 = vrot.lane.b32.xlu0 %v329, 4
      %v346 = vpop.permute.xlu0 %345
      %347 = vrot.lane.b32.xlu0 %v330, 4
      %v348 = vpop.permute.xlu0 %347
      %349 = vrot.lane.b32.xlu0 %v331, 4
      %v350 = vpop.permute.xlu0 %349
      %351 = vrot.lane.b32.xlu0 %v332, 4
      %v352 = vpop.permute.xlu0 %351
      %353 = vrot.lane.b32.xlu0 %v333, 4
      %v354 = vpop.permute.xlu0 %353
      %355 = vrot.lane.b32.xlu0 %v334, 4
      %v356 = vpop.permute.xlu0 %355
      %357 = vrot.lane.b32.xlu0 %v335, 4
      %v358 = vpop.permute.xlu0 %357
      %359 = vrot.lane.b32.xlu0 %v336, 4
      %v360 = vpop.permute.xlu0 %359
      %vm369 = vcmask 64544
      %370 = vst.msk [vmem:[#allocation2] sm:$0xff] %vm369, %v346
      %371 = vst.msk [vmem:[#allocation2 + $0x8] sm:$0xff] %vm369, %v348
      %372 = vst.msk [vmem:[#allocation2 + $0x10] sm:$0xff] %vm369, %v350
      %373 = vst.msk [vmem:[#allocation2 + $0x18] sm:$0xff] %vm369, %v352
      %374 = vst.msk [vmem:[#allocation2 + $0x20] sm:$0xff] %vm369, %v354
      %375 = vst.msk [vmem:[#allocation2 + $0x28] sm:$0xff] %vm369, %v356
      %376 = vst.msk [vmem:[#allocation2 + $0x30] sm:$0xff] %vm369, %v358
      %377 = vst.msk [vmem:[#allocation2 + $0x38] sm:$0xff] %vm369, %v360
      %v378 = vld [vmem:[%s291 + $0x1] sm:$0xff]
      %v379 = vld [vmem:[%s291 + $0x11] sm:$0xff]
      %v380 = vld [vmem:[%s291 + $0x21] sm:$0xff]
      %v381 = vld [vmem:[%s291 + $0x31] sm:$0xff]
      %v382 = vld [vmem:[%s291 + $0x41] sm:$0xff]
      %v383 = vld [vmem:[%s291 + $0x51] sm:$0xff]
      %v384 = vld [vmem:[%s291 + $0x61] sm:$0xff]
      %v385 = vld [vmem:[%s291 + $0x71] sm:$0xff]
      %394 = vrot.lane.b32.xlu0 %v378, 8
      %v395 = vpop.permute.xlu0 %394
      %396 = vrot.lane.b32.xlu0 %v379, 8
      %v397 = vpop.permute.xlu0 %396
      %398 = vrot.lane.b32.xlu0 %v380, 8
      %v399 = vpop.permute.xlu0 %398
      %400 = vrot.lane.b32.xlu0 %v381, 8
      %v401 = vpop.permute.xlu0 %400
      %402 = vrot.lane.b32.xlu0 %v382, 8
      %v403 = vpop.permute.xlu0 %402
      %404 = vrot.lane.b32.xlu0 %v383, 8
      %v405 = vpop.permute.xlu0 %404
      %406 = vrot.lane.b32.xlu0 %v384, 8
      %v407 = vpop.permute.xlu0 %406
      %408 = vrot.lane.b32.xlu0 %v385, 8
      %v409 = vpop.permute.xlu0 %408
      %vm418 = vcmask 97344
      %419 = vst.msk [vmem:[#allocation2] sm:$0xff] %vm418, %v395
      %420 = vst.msk [vmem:[#allocation2 + $0x8] sm:$0xff] %vm418, %v397
      %421 = vst.msk [vmem:[#allocation2 + $0x10] sm:$0xff] %vm418, %v399
      %422 = vst.msk [vmem:[#allocation2 + $0x18] sm:$0xff] %vm418, %v401
      %423 = vst.msk [vmem:[#allocation2 + $0x20] sm:$0xff] %vm418, %v403
      %424 = vst.msk [vmem:[#allocation2 + $0x28] sm:$0xff] %vm418, %v405
      %425 = vst.msk [vmem:[#allocation2 + $0x30] sm:$0xff] %vm418, %v407
      %426 = vst.msk [vmem:[#allocation2 + $0x38] sm:$0xff] %vm418, %v409
      %v427 = vld [vmem:[%s301] sm:$0xff]
      %v428 = vld [vmem:[%s301 + $0x10] sm:$0xff]
      %v429 = vld [vmem:[%s301 + $0x20] sm:$0xff]
      %v430 = vld [vmem:[%s301 + $0x30] sm:$0xff]
      %v431 = vld [vmem:[%s301 + $0x40] sm:$0xff]
      %v432 = vld [vmem:[%s301 + $0x50] sm:$0xff]
      %v433 = vld [vmem:[%s301 + $0x60] sm:$0xff]
      %v434 = vld [vmem:[%s301 + $0x70] sm:$0xff]
      %443 = vrot.lane.b32.xlu0 %v427, 12
      %v444 = vpop.permute.xlu0 %443
      %445 = vrot.lane.b32.xlu0 %v428, 12
      %v446 = vpop.permute.xlu0 %445
      %447 = vrot.lane.b32.xlu0 %v429, 12
      %v448 = vpop.permute.xlu0 %447
      %449 = vrot.lane.b32.xlu0 %v430, 12
      %v450 = vpop.permute.xlu0 %449
      %451 = vrot.lane.b32.xlu0 %v431, 12
      %v452 = vpop.permute.xlu0 %451
      %453 = vrot.lane.b32.xlu0 %v432, 12
      %v454 = vpop.permute.xlu0 %453
      %455 = vrot.lane.b32.xlu0 %v433, 12
      %v456 = vpop.permute.xlu0 %455
      %457 = vrot.lane.b32.xlu0 %v434, 12
      %v458 = vpop.permute.xlu0 %457
      %vm467 = vcmask 130144
      %468 = vst.msk [vmem:[#allocation2] sm:$0xff] %vm467, %v444
      %469 = vst.msk [vmem:[#allocation2 + $0x8] sm:$0xff] %vm467, %v446
      %470 = vst.msk [vmem:[#allocation2 + $0x10] sm:$0xff] %vm467, %v448
      %471 = vst.msk [vmem:[#allocation2 + $0x18] sm:$0xff] %vm467, %v450
      %472 = vst.msk [vmem:[#allocation2 + $0x20] sm:$0xff] %vm467, %v452
      %473 = vst.msk [vmem:[#allocation2 + $0x28] sm:$0xff] %vm467, %v454
      %474 = vst.msk [vmem:[#allocation2 + $0x30] sm:$0xff] %vm467, %v456
      %475 = vst.msk [vmem:[#allocation2 + $0x38] sm:$0xff] %vm467, %v458
      %v476 = vld [vmem:[%s306] sm:$0xff]
      %v477 = vld [vmem:[%s306 + $0x10] sm:$0xff]
      %v478 = vld [vmem:[%s306 + $0x20] sm:$0xff]
      %v479 = vld [vmem:[%s306 + $0x30] sm:$0xff]
      %v480 = vld [vmem:[%s306 + $0x40] sm:$0xff]
      %v481 = vld [vmem:[%s306 + $0x50] sm:$0xff]
      %v482 = vld [vmem:[%s306 + $0x60] sm:$0xff]
      %v483 = vld [vmem:[%s306 + $0x70] sm:$0xff]
      %492 = vrot.lane.b32.xlu0 %v476, 16
      %v493 = vpop.permute.xlu0 %492
      %494 = vrot.lane.b32.xlu0 %v477, 16
      %v495 = vpop.permute.xlu0 %494
      %496 = vrot.lane.b32.xlu0 %v478, 16
      %v497 = vpop.permute.xlu0 %496
      %498 = vrot.lane.b32.xlu0 %v479, 16
      %v499 = vpop.permute.xlu0 %498
      %500 = vrot.lane.b32.xlu0 %v480, 16
      %v501 = vpop.permute.xlu0 %500
      %502 = vrot.lane.b32.xlu0 %v481, 16
      %v503 = vpop.permute.xlu0 %502
      %504 = vrot.lane.b32.xlu0 %v482, 16
      %v505 = vpop.permute.xlu0 %504
      %506 = vrot.lane.b32.xlu0 %v483, 16
      %v507 = vpop.permute.xlu0 %506
      %vm516 = vcmask 162944
      %517 = vst.msk [vmem:[#allocation2] sm:$0xff] %vm516, %v493
      %518 = vst.msk [vmem:[#allocation2 + $0x8] sm:$0xff] %vm516, %v495
      %519 = vst.msk [vmem:[#allocation2 + $0x10] sm:$0xff] %vm516, %v497
      %520 = vst.msk [vmem:[#allocation2 + $0x18] sm:$0xff] %vm516, %v499
      %521 = vst.msk [vmem:[#allocation2 + $0x20] sm:$0xff] %vm516, %v501
      %522 = vst.msk [vmem:[#allocation2 + $0x28] sm:$0xff] %vm516, %v503
      %523 = vst.msk [vmem:[#allocation2 + $0x30] sm:$0xff] %vm516, %v505
      %524 = vst.msk [vmem:[#allocation2 + $0x38] sm:$0xff] %vm516, %v507
      %v525 = vld [vmem:[%s301 + $0x1] sm:$0xff]
      %v526 = vld [vmem:[%s301 + $0x11] sm:$0xff]
      %v527 = vld [vmem:[%s301 + $0x21] sm:$0xff]
      %v528 = vld [vmem:[%s301 + $0x31] sm:$0xff]
      %v529 = vld [vmem:[%s301 + $0x41] sm:$0xff]
      %v530 = vld [vmem:[%s301 + $0x51] sm:$0xff]
      %v531 = vld [vmem:[%s301 + $0x61] sm:$0xff]
      %v532 = vld [vmem:[%s301 + $0x71] sm:$0xff]
      %541 = vrot.lane.b32.xlu0 %v525, 20
      %v542 = vpop.permute.xlu0 %541
      %543 = vrot.lane.b32.xlu0 %v526, 20
      %v544 = vpop.permute.xlu0 %543
      %545 = vrot.lane.b32.xlu0 %v527, 20
      %v546 = vpop.permute.xlu0 %545
      %547 = vrot.lane.b32.xlu0 %v528, 20
      %v548 = vpop.permute.xlu0 %547
      %549 = vrot.lane.b32.xlu0 %v529, 20
      %v550 = vpop.permute.xlu0 %549
      %551 = vrot.lane.b32.xlu0 %v530, 20
      %v552 = vpop.permute.xlu0 %551
      %553 = vrot.lane.b32.xlu0 %v531, 20
      %v554 = vpop.permute.xlu0 %553
      %555 = vrot.lane.b32.xlu0 %v532, 20
      %v556 = vpop.permute.xlu0 %555
      %vm565 = vcmask 195744
      %566 = vst.msk [vmem:[#allocation2] sm:$0xff] %vm565, %v542
      %567 = vst.msk [vmem:[#allocation2 + $0x8] sm:$0xff] %vm565, %v544
      %568 = vst.msk [vmem:[#allocation2 + $0x10] sm:$0xff] %vm565, %v546
      %569 = vst.msk [vmem:[#allocation2 + $0x18] sm:$0xff] %vm565, %v548
      %570 = vst.msk [vmem:[#allocation2 + $0x20] sm:$0xff] %vm565, %v550
      %571 = vst.msk [vmem:[#allocation2 + $0x28] sm:$0xff] %vm565, %v552
      %572 = vst.msk [vmem:[#allocation2 + $0x30] sm:$0xff] %vm565, %v554
      %573 = vst.msk [vmem:[#allocation2 + $0x38] sm:$0xff] %vm565, %v556
      %s574 = scalar_lea.vmem %s291, 16
      %v575 = vld [vmem:[%s574] sm:$0xff]
      %v576 = vld [vmem:[%s574 + $0x10] sm:$0xff]
      %v577 = vld [vmem:[%s574 + $0x20] sm:$0xff]
      %v578 = vld [vmem:[%s574 + $0x30] sm:$0xff]
      %v579 = vld [vmem:[%s574 + $0x40] sm:$0xff]
      %v580 = vld [vmem:[%s574 + $0x50] sm:$0xff]
      %v581 = vld [vmem:[%s574 + $0x60] sm:$0xff]
      %v582 = vld [vmem:[%s574 + $0x70] sm:$0xff]
      %591 = vrot.lane.b32.xlu0 %v575, 24
      %v592 = vpop.permute.xlu0 %591
      %593 = vrot.lane.b32.xlu0 %v576, 24
      %v594 = vpop.permute.xlu0 %593
      %595 = vrot.lane.b32.xlu0 %v577, 24
      %v596 = vpop.permute.xlu0 %595
      %597 = vrot.lane.b32.xlu0 %v578, 24
      %v598 = vpop.permute.xlu0 %597
      %599 = vrot.lane.b32.xlu0 %v579, 24
      %v600 = vpop.permute.xlu0 %599
      %601 = vrot.lane.b32.xlu0 %v580, 24
      %v602 = vpop.permute.xlu0 %601
      %603 = vrot.lane.b32.xlu0 %v581, 24
      %v604 = vpop.permute.xlu0 %603
      %605 = vrot.lane.b32.xlu0 %v582, 24
      %v606 = vpop.permute.xlu0 %605
      %vm615 = vcmask 228544
      %616 = vst.msk [vmem:[#allocation2] sm:$0xff] %vm615, %v592
      %617 = vst.msk [vmem:[#allocation2 + $0x8] sm:$0xff] %vm615, %v594
      %618 = vst.msk [vmem:[#allocation2 + $0x10] sm:$0xff] %vm615, %v596
      %619 = vst.msk [vmem:[#allocation2 + $0x18] sm:$0xff] %vm615, %v598
      %620 = vst.msk [vmem:[#allocation2 + $0x20] sm:$0xff] %vm615, %v600
      %621 = vst.msk [vmem:[#allocation2 + $0x28] sm:$0xff] %vm615, %v602
      %622 = vst.msk [vmem:[#allocation2 + $0x30] sm:$0xff] %vm615, %v604
      %623 = vst.msk [vmem:[#allocation2 + $0x38] sm:$0xff] %vm615, %v606
      %s624 = scalar_lea.vmem %s296, 16
      %v625 = vld [vmem:[%s624] sm:$0xff]
      %v626 = vld [vmem:[%s624 + $0x10] sm:$0xff]
      %v627 = vld [vmem:[%s624 + $0x20] sm:$0xff]
      %v628 = vld [vmem:[%s624 + $0x30] sm:$0xff]
      %v629 = vld [vmem:[%s624 + $0x40] sm:$0xff]
      %v630 = vld [vmem:[%s624 + $0x50] sm:$0xff]
      %v631 = vld [vmem:[%s624 + $0x60] sm:$0xff]
      %v632 = vld [vmem:[%s624 + $0x70] sm:$0xff]
      %641 = vrot.lane.b32.xlu0 %v625, 28
      %v642 = vpop.permute.xlu0 %641
      %643 = vrot.lane.b32.xlu0 %v626, 28
      %v644 = vpop.permute.xlu0 %643
      %645 = vrot.lane.b32.xlu0 %v627, 28
      %v646 = vpop.permute.xlu0 %645
      %647 = vrot.lane.b32.xlu0 %v628, 28
      %v648 = vpop.permute.xlu0 %647
      %649 = vrot.lane.b32.xlu0 %v629, 28
      %v650 = vpop.permute.xlu0 %649
      %651 = vrot.lane.b32.xlu0 %v630, 28
      %v652 = vpop.permute.xlu0 %651
      %653 = vrot.lane.b32.xlu0 %v631, 28
      %v654 = vpop.permute.xlu0 %653
      %655 = vrot.lane.b32.xlu0 %v632, 28
      %v656 = vpop.permute.xlu0 %655
      %vm665 = vcmask 261344
      %666 = vst.msk [vmem:[#allocation2] sm:$0xff] %vm665, %v642
      %667 = vst.msk [vmem:[#allocation2 + $0x8] sm:$0xff] %vm665, %v644
      %668 = vst.msk [vmem:[#allocation2 + $0x10] sm:$0xff] %vm665, %v646
      %669 = vst.msk [vmem:[#allocation2 + $0x18] sm:$0xff] %vm665, %v648
      %670 = vst.msk [vmem:[#allocation2 + $0x20] sm:$0xff] %vm665, %v650
      %671 = vst.msk [vmem:[#allocation2 + $0x28] sm:$0xff] %vm665, %v652
      %672 = vst.msk [vmem:[#allocation2 + $0x30] sm:$0xff] %vm665, %v654
      %673 = vst.msk [vmem:[#allocation2 + $0x38] sm:$0xff] %vm665, %v656
      %v674 = vld [vmem:[%s574 + $0x1] sm:$0xff]
      %v675 = vld [vmem:[%s574 + $0x11] sm:$0xff]
      %v676 = vld [vmem:[%s574 + $0x21] sm:$0xff]
      %v677 = vld [vmem:[%s574 + $0x31] sm:$0xff]
      %v678 = vld [vmem:[%s574 + $0x41] sm:$0xff]
      %v679 = vld [vmem:[%s574 + $0x51] sm:$0xff]
      %v680 = vld [vmem:[%s574 + $0x61] sm:$0xff]
      %v681 = vld [vmem:[%s574 + $0x71] sm:$0xff]
      %690 = vrot.lane.b32.xlu0 %v674, 32
      %v691 = vpop.permute.xlu0 %690
      %692 = vrot.lane.b32.xlu0 %v675, 32
      %v693 = vpop.permute.xlu0 %692
      %694 = vrot.lane.b32.xlu0 %v676, 32
      %v695 = vpop.permute.xlu0 %694
      %696 = vrot.lane.b32.xlu0 %v677, 32
      %v697 = vpop.permute.xlu0 %696
      %698 = vrot.lane.b32.xlu0 %v678, 32
      %v699 = vpop.permute.xlu0 %698
      %700 = vrot.lane.b32.xlu0 %v679, 32
      %v701 = vpop.permute.xlu0 %700
      %702 = vrot.lane.b32.xlu0 %v680, 32
      %v703 = vpop.permute.xlu0 %702
      %704 = vrot.lane.b32.xlu0 %v681, 32
      %v705 = vpop.permute.xlu0 %704
      %vm714 = vcmask 294144
      %715 = vst.msk [vmem:[#allocation2] sm:$0xff] %vm714, %v691
      %716 = vst.msk [vmem:[#allocation2 + $0x8] sm:$0xff] %vm714, %v693
      %717 = vst.msk [vmem:[#allocation2 + $0x10] sm:$0xff] %vm714, %v695
      %718 = vst.msk [vmem:[#allocation2 + $0x18] sm:$0xff] %vm714, %v697
      %719 = vst.msk [vmem:[#allocation2 + $0x20] sm:$0xff] %vm714, %v699
      %720 = vst.msk [vmem:[#allocation2 + $0x28] sm:$0xff] %vm714, %v701
      %721 = vst.msk [vmem:[#allocation2 + $0x30] sm:$0xff] %vm714, %v703
      %722 = vst.msk [vmem:[#allocation2 + $0x38] sm:$0xff] %vm714, %v705
      %v723 = vld [vmem:[#allocation2] sm:$0xff]
      %v724 = vld [vmem:[#allocation2 + $0x8] sm:$0xff]
      %v725 = vld [vmem:[#allocation2 + $0x10] sm:$0xff]
      %v726 = vld [vmem:[#allocation2 + $0x18] sm:$0xff]
      %v727 = vld [vmem:[#allocation2 + $0x20] sm:$0xff]
      %v728 = vld [vmem:[#allocation2 + $0x28] sm:$0xff]
      %v729 = vld [vmem:[#allocation2 + $0x30] sm:$0xff]
      %v730 = vld [vmem:[#allocation2 + $0x38] sm:$0xff]
      %v731 = vld [vmem:[%s4] sm:$0xff]
      %v732 = vld [vmem:[%s4 + $0x8] sm:$0xff]
      %v733 = vld [vmem:[%s4 + $0x10] sm:$0xff]
      %v734 = vld [vmem:[%s4 + $0x18] sm:$0xff]
      %v735 = vld [vmem:[%s4 + $0x20] sm:$0xf]
      %v736 = vld [vmem:[%s5] sm:$0x1]
      %v738 = vperm.slane %v736, 0
      %vm740 = vcmask 293888
      %v742 = vsel %vm740, %v723, 0
      %v745 = vsel %vm740, %v724, 0
      %v748 = vsel %vm740, %v725, 0
      %v751 = vsel %vm740, %v726, 0
      %v754 = vsel %vm740, %v727, 0
      %v757 = vsel %vm740, %v728, 0
      %v760 = vsel %vm740, %v729, 0
      %v763 = vsel %vm740, %v730, 0
      %vm765 = vcmask 1043456
      %v767 = vsel %vm765, %v735, 0
      %769 = vmatpush.msra.mxu0 0.0
      %770 = vmatpush.msra.mxu0 0.0
      %771 = vmatpush.msra.mxu0 0.0
      %772 = vmatpush.msra.mxu0 0.0
      %773 = vmatpush.msra.mxu0 0.0
      %774 = vmatpush.msra.mxu0 0.0
      %775 = vmatpush.msra.mxu0 0.0
      %776 = vmatpush.msra.mxu0 0.0
      %777 = vmatpush.msra.mxu0 0.0
      %778 = vmatpush.msra.mxu0 0.0
      %779 = vmatpush.msra.mxu0 0.0
      %780 = vmatpush.msra.mxu0 %v767
      %781 = vmatpush.msra.mxu0 %v734
      %782 = vmatpush.msra.mxu0 %v733
      %783 = vmatpush.msra.mxu0 %v732
      %784 = vmatpush.msra.mxu0 %v731
      %785 = vmatmul.f32.gmra.mxu0 %v742
      %v786 = vpop.f32.mrf.mxu0
      %v787 = vadd.f32 %v738, %v786
      %788 = vmatmul.f32.gmra.mxu0 %v745
      %v789 = vpop.f32.mrf.mxu0
      %v790 = vadd.f32 %v738, %v789
      %791 = vmatmul.f32.gmra.mxu0 %v748
      %v792 = vpop.f32.mrf.mxu0
      %v793 = vadd.f32 %v738, %v792
      %794 = vmatmul.f32.gmra.mxu0 %v751
      %v795 = vpop.f32.mrf.mxu0
      %v796 = vadd.f32 %v738, %v795
      %797 = vmatmul.f32.gmra.mxu0 %v754
      %v798 = vpop.f32.mrf.mxu0
      %v799 = vadd.f32 %v738, %v798
      %800 = vmatmul.f32.gmra.mxu0 %v757
      %v801 = vpop.f32.mrf.mxu0
      %v802 = vadd.f32 %v738, %v801
      %803 = vmatmul.f32.gmra.mxu0 %v760
      %v804 = vpop.f32.mrf.mxu0
      %v805 = vadd.f32 %v738, %v804
      %806 = vmatmul.f32.gmra.mxu0 %v763
      %v807 = vpop.f32.mrf.mxu0
      %v808 = vadd.f32 %v738, %v807
      %809 = vdwg.mxu0
      %810 = vst.msk [vmem:[%s311] sm:$0xff] %vm320, %v787
      %811 = vst.msk [vmem:[%s311 + $0x8] sm:$0xff] %vm320, %v790
      %812 = vst.msk [vmem:[%s311 + $0x10] sm:$0xff] %vm320, %v793
      %813 = vst.msk [vmem:[%s311 + $0x18] sm:$0xff] %vm320, %v796
      %814 = vst.msk [vmem:[%s311 + $0x20] sm:$0xff] %vm320, %v799
      %815 = vst.msk [vmem:[%s311 + $0x28] sm:$0xff] %vm320, %v802
      %816 = vst.msk [vmem:[%s311 + $0x30] sm:$0xff] %vm320, %v805
      %817 = vst.msk [vmem:[%s311 + $0x38] sm:$0xff] %vm320, %v808
      %p818 = scmp.lt.s32.totalorder %s17, 1
      %s819 = scalar_select %p818, %s17, 1
      %s820 = smul.addr %s819, 8
      %s821 = smul.addr %s820, 8
      %s822 = scalar_lea.vmem %s6, %s821
      // Predicated region
      $region45: #{tpu_custom_call.1} parent=43 // pred_check
        %p823 = pneg %p181
      $region46: #{tpu_custom_call.1} parent=43 // pred_check_branch
        %825 = sbr.rel (%p823) target = $region48
      $region47: #{tpu_custom_call.1} parent=43 // pred_region
        _
      $region48: #{tpu_custom_call.1} parent=43 // pred_fallthru
        _
    $region44: #{tpu_custom_call.1} parent=5 // pred_fallthru
      _
    %p826 = scmp.le.s32.totalorder 2, %s12
    // Predicated region
    $region49: #{tpu_custom_call.1} parent=5 // pred_check
      %p827 = pneg %p826
    $region50: #{tpu_custom_call.1} parent=5 // pred_check_branch
      %829 = sbr.rel (%p827) target = $region52
    $region51: #{tpu_custom_call.1} parent=5 // pred_region
      %s830 = ssub.s32 %s12, 2
      // Predicated region
      $region53: #{tpu_custom_call.1} parent=51 // pred_check
        %p831 = pneg %p187
      $region54: #{tpu_custom_call.1} parent=51 // pred_check_branch
        %833 = sbr.rel (%p831) target = $region56
      $region55: #{tpu_custom_call.1} parent=51 // pred_region
        %p834 = scmp.lt.s32.totalorder %s18, 1
        %s835 = scalar_select %p834, %s18, 1
        %s836 = smul.addr %s835, 8
        %s837 = smul.addr %s836, 8
        %s838 = scalar_lea.vmem %s6, %s837
      $region56: #{tpu_custom_call.1} parent=51 // pred_fallthru
        _
    $region52: #{tpu_custom_call.1} parent=5 // pred_fallthru
      _
  $region6: #{tpu_custom_call.1} parent=0 // loop_footer
    %s16 = sadd.s32 1, %s12
  $region7: #{tpu_custom_call.1} parent=0 // loop_footer_branch
    %11 = sbr.rel target = $region3
  $region8: #{tpu_custom_call.1} parent=0 // loop_exit
    _

</llo_original>
